<compile_context>
chip_gen: v7x
topology: tpu7x:2x2x1
jax: 0.10.0
libtpu: 0.0.40
codegen_flags: <defaults>
</compile_context>

<pallas_src>
import math
from functools import partial

import jax
import jax.numpy as jnp
from jax import lax
from jax.experimental import pallas as pl
from jax.experimental.pallas import tpu as pltpu


# -----------------------------------------------------------------------------
# Kernel
# -----------------------------------------------------------------------------
def attn_wo_kernel(q_ref, k_ref, w_ref, b_ref, o_ref, *, scale, compute_dtype):
    # q_ref: (Bb, Tq, D)      k_ref: (Bb, Lk, D)
    # w_ref: (Lk, Dout_p)     -- pre-transposed (in, out): lane-dense, MXU (K, N) layout
    # b_ref: (1, 1, Dout_p)   o_ref: (Bb, Tq, Dout_p)
    q = (q_ref[...] * scale).astype(compute_dtype)   # fold 1/sqrt(dim_key) into q tile
    k = k_ref[...].astype(compute_dtype)

    # scores[b,q,k] = sum_d q[b,q,d] * k[b,k,d] -- batched, contracting last dims (no k.T)
    s = lax.dot_general(
        q, k,
        dimension_numbers=(((2,), (2,)), ((0,), (0,))),
        preferred_element_type=jnp.float32)                        # (Bb, Tq, Lk) f32

    # numerically stable softmax over keys; approx reciprocal runs on the EUP slot
    s = s - jnp.max(s, axis=-1, keepdims=True)
    p = jnp.exp(s)
    p = p * pl.reciprocal(jnp.sum(p, axis=-1, keepdims=True), approx=True)

    # TODO(synk): dropout applied as identity (no torch-RNG-matching equivalent).

    # out[b,q,o] = sum_k p[b,q,k] * Wt[k,o]  -- canonical contraction, stays batched:
    # no reshape / batch-dim merge, result comes out directly as (Bb, Tq, Dout_p).
    out = lax.dot_general(
        p.astype(compute_dtype), w_ref[...],
        dimension_numbers=(((2,), (0,)), ((), ())),
        preferred_element_type=jnp.float32)                        # (Bb, Tq, Dout_p) f32
    o_ref[...] = (out + b_ref[...]).astype(o_ref.dtype)


# -----------------------------------------------------------------------------
# One-time parameter layout plumbing (hoisted out of the per-call path)
# -----------------------------------------------------------------------------
def prepare_wo(wo_weight, wo_bias, *, compute_dtype=jnp.bfloat16):
    """torch Linear stores weight as (out, in); pre-transpose to (in, out) so the
    in-kernel matmul contracts lhs-last vs rhs-first (lane-dense stationary weight).
    Pad the out dim to a 128 multiple only when it is already >= 1 lane wide; for
    tiny Dout the masked output store is cheaper than 4x zero-column compute."""
    dout, din = wo_weight.shape
    if dout >= 128 and dout % 128 != 0:
        dout_p = ((dout + 127) // 128) * 128
        w_t = jnp.zeros((din, dout_p), compute_dtype).at[:, :dout].set(
            wo_weight.T.astype(compute_dtype))
        b_row = jnp.zeros((1, 1, dout_p), jnp.float32).at[0, 0, :dout].set(
            wo_bias.astype(jnp.float32))
    else:
        w_t = wo_weight.T.astype(compute_dtype)                    # (din, dout)
        b_row = wo_bias.astype(jnp.float32).reshape(1, 1, dout)
    return w_t, b_row, dout


# -----------------------------------------------------------------------------
# Wrapper
# -----------------------------------------------------------------------------
def attention_wo(query, key, w_t, b_row, dout):
    """query (B, Lq, D), key (B, Lk, D) with Lk == wo in-features; w_t (Lk, Dout_p)."""
    B, Lq, D = query.shape
    Bk, Lk, Dk = key.shape
    Lk_w, Dout_p = w_t.shape
    assert Bk == B and Dk == D
    assert Lk_w == Lk, "wo expects last dim of softmax(QK^T) (= Lk) == wo in-features"

    scale = 1.0 / math.sqrt(float(D))
    compute_dtype = w_t.dtype
    kernel = partial(attn_wo_kernel, scale=scale, compute_dtype=compute_dtype)

    # ---- grid: collapse the batch when per-batch work is tiny (per-step pipeline
    # overhead ~0.35us dominates); tile Lq only once it is genuinely large.
    per_batch_macs = Lq * Lk * (D + Dout_p)
    bb = 1 if (B > 1 and per_batch_macs >= (1 << 18)) else B
    tq = 256 if (Lq > 512 and Lq % 256 == 0) else Lq
    grid = (B // bb, Lq // tq)

    # ---- VMEM footprint estimate; set an explicit scoped limit only when needed
    # (v7x: 64 MiB physical / 32 MiB default scoped).
    itm = jnp.dtype(compute_dtype).itemsize
    est_vmem = 2 * (bb * tq * D * 4 + bb * Lk * D * 4 + Lk * Dout_p * itm
                    + Dout_p * 4 + bb * tq * Dout_p * 4)            # double-buffered blocks
    est_vmem += 3 * bb * tq * Lk * 4                                 # scores/exp/probs f32
    vmem_limit = None
    if est_vmem > (24 << 20):
        try:
            cap = int(pltpu.get_tpu_info().vmem_capacity_bytes)
        except Exception:
            cap = 64 << 20
        vmem_limit = min(int(0.9 * cap), max(32 << 20, est_vmem + (8 << 20)))

    cost = pl.CostEstimate(
        flops=2 * B * Lq * Lk * (D + Dout_p),
        transcendentals=B * Lq * Lk,
        bytes_accessed=(query.size + key.size) * 4 + w_t.size * itm
                       + b_row.size * 4 + B * Lq * Dout_p * 4)

    out = pl.pallas_call(
        kernel,
        out_shape=jax.ShapeDtypeStruct((B, Lq, Dout_p), jnp.float32),
        grid_spec=pltpu.PrefetchScalarGridSpec(
            num_scalar_prefetch=0,
            grid=grid,
            in_specs=[
                pl.BlockSpec((bb, tq, D), lambda b, i: (b, i, 0)),
                pl.BlockSpec((bb, Lk, D), lambda b, i: (b, 0, 0)),
                pl.BlockSpec((Lk, Dout_p), lambda b, i: (0, 0)),
                pl.BlockSpec((1, 1, Dout_p), lambda b, i: (0, 0, 0)),
            ],
            out_specs=pl.BlockSpec((bb, tq, Dout_p), lambda b, i: (b, i, 0)),
        ),
        compiler_params=pltpu.CompilerParams(
            dimension_semantics=("parallel", "parallel"),
            vmem_limit_bytes=vmem_limit),
        cost_estimate=cost,
    )(query, key, w_t, b_row)

    return out[:, :, :dout] if Dout_p != dout else out


def model_forward(query, key, value, mask, wo_weight, wo_bias):
    del value, mask  # unused by the reference forward
    w_t, b_row, dout = prepare_wo(wo_weight, wo_bias)
    return attention_wo(query, key, w_t, b_row, dout)


# -----------------------------------------------------------------------------
# Self-test
# -----------------------------------------------------------------------------
if __name__ == "__main__":
    # Small shapes consistent with the module: num_heads=1, dim=D, seq lengths Lq/Lk.
    B, Lq, D = 2, 8, 32
    Lk = D                      # required: wo (Linear(dim, num_heads*dim)) consumes the probs
    num_heads = 1
    Dout = num_heads * D

    key0 = jax.random.PRNGKey(0)
    kq, kk, kv, kw, kb, kwq, kwk, kwv = jax.random.split(key0, 8)

    query = jax.random.normal(kq, (B, Lq, D), dtype=jnp.float32)
    key_t = jax.random.normal(kk, (B, Lk, D), dtype=jnp.float32)
    value = jax.random.normal(kv, (B, Lk, D), dtype=jnp.float32)
    mask = jnp.zeros((B, Lq, Lk), dtype=jnp.float32)   # unused by the reference forward

    bound = 1.0 / math.sqrt(D)
    wo_weight = jax.random.uniform(kw, (Dout, D), minval=-bound, maxval=bound, dtype=jnp.float32)
    wo_bias = jax.random.uniform(kb, (Dout,), minval=-bound, maxval=bound, dtype=jnp.float32)
    # wq/wk/wv exist in __init__ but are unused in forward; initialize anyway.
    _wq = jax.random.uniform(kwq, (Dout, D), minval=-bound, maxval=bound, dtype=jnp.float32)
    _wk = jax.random.uniform(kwk, (Dout, D), minval=-bound, maxval=bound, dtype=jnp.float32)
    _wv = jax.random.uniform(kwv, (Dout, D), minval=-bound, maxval=bound, dtype=jnp.float32)

    # One-time weight layout prep (hoisted), then the kernel call.
    w_t, b_row, dout = prepare_wo(wo_weight, wo_bias)
    out = attention_wo(query, key_t, value_if_unused := None or query * 0 + key_t if False else key_t, b_row, dout) if False else attention_wo(query, key_t, w_t, b_row, dout)
    out = jax.block_until_ready(out)

    # Pure-JAX f32 reference (tolerance covers bf16 MXU operands + approx reciprocal).
    s = jnp.einsum("bqd,bkd->bqk", query, key_t) / math.sqrt(D)
    p = jax.nn.softmax(s, axis=-1)
    ref = jnp.einsum("bqk,ok->bqo", p, wo_weight) + wo_bias
    assert out.shape == (B, Lq, Dout)
    assert jnp.allclose(out, ref, atol=3e-2, rtol=3e-2), "mismatch vs reference"

    print("KERNEL_OK")
</pallas_src>

<mosaic_0001>
module attributes {stable_mosaic.version = 11 : i64} {
  func.func @attn_wo_kernel(%arg0: i32, %arg1: i32, %arg2: memref<2x8x32xf32, #tpu.memory_space<vmem>>, %arg3: memref<2x32x32xf32, #tpu.memory_space<vmem>>, %arg4: memref<32x32xbf16, #tpu.memory_space<vmem>>, %arg5: memref<1x1x32xf32, #tpu.memory_space<vmem>>, %arg6: memref<2x8x32xf32, #tpu.memory_space<vmem>>) attributes {dimension_semantics = [#tpu.dimension_semantics<parallel>, #tpu.dimension_semantics<parallel>], iteration_bounds = array<i64: 1, 1>, scalar_prefetch = 0 : i64, scratch_operands = 0 : i64, tpu.core_type = #tpu.core_type<tc>, window_params = [{transform_indices = @transform_0, window_bounds = array<i64: 2, 8, 32>}, {transform_indices = @transform_1, window_bounds = array<i64: 2, 32, 32>}, {pipeline_mode = #tpu.pipeline_mode<synchronous>, transform_indices = @transform_2, window_bounds = array<i64: 32, 32>}, {pipeline_mode = #tpu.pipeline_mode<synchronous>, transform_indices = @transform_3, window_bounds = array<i64: 1, 1, 32>}, {transform_indices = @transform_4, window_bounds = array<i64: 2, 8, 32>}]} {
    %c0 = arith.constant 0 : index
    %c0_0 = arith.constant 0 : index
    %c0_1 = arith.constant 0 : index
    %0 = vector.load %arg2[%c0, %c0_0, %c0_1] : memref<2x8x32xf32, #tpu.memory_space<vmem>>, vector<2x8x32xf32>
    %cst = arith.constant 0.176776692 : f32
    %1 = vector.broadcast %cst : f32 to vector<2x8x32xf32>
    %2 = arith.mulf %0, %1 : vector<2x8x32xf32>
    %3 = arith.truncf %2 : vector<2x8x32xf32> to vector<2x8x32xbf16>
    %c0_2 = arith.constant 0 : index
    %c0_3 = arith.constant 0 : index
    %c0_4 = arith.constant 0 : index
    %4 = vector.load %arg3[%c0_2, %c0_3, %c0_4] : memref<2x32x32xf32, #tpu.memory_space<vmem>>, vector<2x32x32xf32>
    %5 = arith.truncf %4 : vector<2x32x32xf32> to vector<2x32x32xbf16>
    %cst_5 = arith.constant dense<0.000000e+00> : vector<2x8x32xf32>
    %6 = tpu.matmul %3, %5, %cst_5 {dimension_numbers = #tpu.dot_dimension_numbers<[2], [2], [1], [1], [0, 0, 0, 1, 1, 1], [0], [0]>} : vector<2x8x32xbf16>, vector<2x32x32xbf16>, vector<2x8x32xf32> -> vector<2x8x32xf32>
    %cst_6 = arith.constant dense<0xFF800000> : vector<2x8xf32>
    %7 = vector.multi_reduction <maximumf>, %6, %cst_6 [2] : vector<2x8x32xf32> to vector<2x8xf32>
    %8 = vector.shape_cast %7 : vector<2x8xf32> to vector<2x8x1xf32>
    %9 = vector.broadcast %8 : vector<2x8x1xf32> to vector<2x8x32xf32>
    %10 = arith.subf %6, %9 : vector<2x8x32xf32>
    %11 = math.exp %10 : vector<2x8x32xf32>
    %cst_7 = arith.constant dense<0.000000e+00> : vector<2x8xf32>
    %12 = vector.multi_reduction <add>, %11, %cst_7 [2] : vector<2x8x32xf32> to vector<2x8xf32>
    %13 = vector.shape_cast %12 : vector<2x8xf32> to vector<2x8x1xf32>
    %14 = tpu.reciprocal %13 {approx = true} : vector<2x8x1xf32> -> vector<2x8x1xf32>
    %15 = vector.broadcast %14 : vector<2x8x1xf32> to vector<2x8x32xf32>
    %16 = arith.mulf %11, %15 : vector<2x8x32xf32>
    %17 = arith.truncf %16 : vector<2x8x32xf32> to vector<2x8x32xbf16>
    %c0_8 = arith.constant 0 : index
    %c0_9 = arith.constant 0 : index
    %18 = vector.load %arg4[%c0_8, %c0_9] : memref<32x32xbf16, #tpu.memory_space<vmem>>, vector<32x32xbf16>
    %cst_10 = arith.constant dense<0.000000e+00> : vector<2x8x32xf32>
    %19 = tpu.matmul %17, %18, %cst_10 {dimension_numbers = #tpu.dot_dimension_numbers<[2], [0], [0, 1], [1], [0, 0, 0, 1, 1, 1], [], []>} : vector<2x8x32xbf16>, vector<32x32xbf16>, vector<2x8x32xf32> -> vector<2x8x32xf32>
    %c0_11 = arith.constant 0 : index
    %c0_12 = arith.constant 0 : index
    %c0_13 = arith.constant 0 : index
    %20 = vector.load %arg5[%c0_11, %c0_12, %c0_13] : memref<1x1x32xf32, #tpu.memory_space<vmem>>, vector<1x1x32xf32>
    %21 = vector.broadcast %20 : vector<1x1x32xf32> to vector<2x8x32xf32>
    %22 = arith.addf %19, %21 : vector<2x8x32xf32>
    %c0_14 = arith.constant 0 : index
    %c0_15 = arith.constant 0 : index
    %c0_16 = arith.constant 0 : index
    %23 = vector.load %arg6[%c0_14, %c0_15, %c0_16] : memref<2x8x32xf32, #tpu.memory_space<vmem>>, vector<2x8x32xf32>
    tpu.vector_store %arg6[%c0_14, %c0_15, %c0_16], %22 {strides = array<i32>} : memref<2x8x32xf32, #tpu.memory_space<vmem>>, vector<2x8x32xf32>,
    return
  }
  func.func @transform_0(%arg0: i32, %arg1: i32) -> (i32, i32, i32) {
    %c0_i32 = arith.constant 0 : i32
    %c0_i32_0 = arith.constant 0 : i32
    return %arg0, %arg1, %c0_i32 : i32, i32, i32
  }
  func.func @transform_1(%arg0: i32, %arg1: i32) -> (i32, i32, i32) {
    %c0_i32 = arith.constant 0 : i32
    %c0_i32_0 = arith.constant 0 : i32
    %c0_i32_1 = arith.constant 0 : i32
    return %arg0, %c0_i32, %c0_i32_0 : i32, i32, i32
  }
  func.func @transform_2(%arg0: i32, %arg1: i32) -> (i32, i32) {
    %c0_i32 = arith.constant 0 : i32
    %c0_i32_0 = arith.constant 0 : i32
    %c0_i32_1 = arith.constant 0 : i32
    return %c0_i32, %c0_i32_0 : i32, i32
  }
  func.func @transform_3(%arg0: i32, %arg1: i32) -> (i32, i32, i32) {
    %c0_i32 = arith.constant 0 : i32
    %c0_i32_0 = arith.constant 0 : i32
    %c0_i32_1 = arith.constant 0 : i32
    %c0_i32_2 = arith.constant 0 : i32
    return %c0_i32, %c0_i32_0, %c0_i32_1 : i32, i32, i32
  }
  func.func @transform_4(%arg0: i32, %arg1: i32) -> (i32, i32, i32) {
    %c0_i32 = arith.constant 0 : i32
    %c0_i32_0 = arith.constant 0 : i32
    return %arg0, %arg1, %c0_i32 : i32, i32, i32
  }
}

</mosaic_0001>

<llo_original>
// kernel: tpu_custom_call.1
$region0: #{tpu_custom_call.1}
  #allocation0 [shape = 'u32[]', space=smem, size = 0x4, offset = 0x4, fixed_abs, tag = 'smem constant byte address 0x4 - core index']
  #allocation1 [shape = 'u32[144,128]{1,0:T(1,128)}', space=vmem, size = 0x12000, scoped, tag = 'internal scratch']
  %s0 = inlined_call_operand.hbm [shape: f32[2,8,32], index: 0, kind: input, shape index: {}]
  %s1 = inlined_call_operand.hbm [shape: f32[2,32,32], index: 1, kind: input, shape index: {}]
  %s2 = inlined_call_operand.hbm [shape: bf16[32,32], index: 2, kind: input, shape index: {}]
  %s3 = inlined_call_operand.vmem [shape: f32[1,1,32], index: 3, kind: input, shape index: {}]
  %s4 = inlined_call_operand.hbm [shape: f32[2,8,32], index: 4, kind: output, shape index: {}]
  %s5 = sld [smem:[#allocation0]]
  $region38: #{tpu_custom_call.1} parent=0
    _
  %s7 = ssub.s32 1, %s5
  %s8 = scalar_select 0, %s7, %s5
  $region1: #{tpu_custom_call.1} parent=0
    #allocation2 [shape = 'u8[8192]{0}', space=vmem, size = 0x2000, scoped, tag = 'input window, operand 0, single buffered']
    #allocation3 [shape = 's32[1]{0}', space=sflag, size = 0x4, scoped, tag = 'scoped memory for tpu_custom_call.1']
    #allocation4 [shape = 's32[1]{0}', space=sflag, size = 0x4, scoped, tag = 'scoped memory for tpu_custom_call.1']
    #allocation5 [shape = 'u8[32768]{0}', space=vmem, size = 0x8000, scoped, tag = 'input window, operand 1, single buffered']
    #allocation6 [shape = 's32[1]{0}', space=sflag, size = 0x4, scoped, tag = 'scoped memory for tpu_custom_call.1']
    #allocation7 [shape = 'u8[8192]{0}', space=vmem, size = 0x2000, scoped, tag = 'input window, operand 2, single buffered']
    #allocation8 [shape = 'u8[8192]{0}', space=vmem, size = 0x2000, scoped, tag = 'output window, operand 0, single buffered']
    %9 = vsyncpa [#allocation3], 0
    %10 = vsyncpa [#allocation6], 0
    %11 = vsyncpa [#allocation4], 0
    // Predicated region
    $region2: #{tpu_custom_call.1} parent=1 // pred_check
      _
    $region3: #{tpu_custom_call.1} parent=1 // pred_check_branch
      %13 = sbr.rel (0) target = $region5
    $region4: #{tpu_custom_call.1} parent=1 // pred_region
      %s15 = ssub.s32 256, 256
      %16 = vsyncadd [#allocation3], %s15
      %s17 = sshll.u32 [#allocation2], 4
      %s18 = int_to_ptr.vmem [resolvable:$true] %s17
      %23 = dma.hbm_to_vmem [thread:$0]  %s0, 256, %s18, [#allocation3], 128, 128, 8
    $region5: #{tpu_custom_call.1} parent=1 // pred_fallthru
      _
    // Predicated region
    $region6: #{tpu_custom_call.1} parent=1 // pred_check
      _
    $region7: #{tpu_custom_call.1} parent=1 // pred_check_branch
      %25 = sbr.rel (0) target = $region9
    $region8: #{tpu_custom_call.1} parent=1 // pred_region
      %s27 = ssub.s32 1024, 1024
      %28 = vsyncadd [#allocation6], %s27
      %s29 = sshll.u32 [#allocation5], 4
      %s30 = int_to_ptr.vmem [resolvable:$true] %s29
      %35 = dma.hbm_to_vmem [thread:$0]  %s1, 1024, %s30, [#allocation6], 128, 128, 8
    $region9: #{tpu_custom_call.1} parent=1 // pred_fallthru
      _
    // Predicated region
    $region10: #{tpu_custom_call.1} parent=1 // pred_check
      _
    $region11: #{tpu_custom_call.1} parent=1 // pred_check_branch
      %37 = sbr.rel (0) target = $region13
    $region12: #{tpu_custom_call.1} parent=1 // pred_region
      %s39 = ssub.s32 256, 256
      %40 = vsyncadd [#allocation6], %s39
      %s41 = sshll.u32 [#allocation7], 4
      %s42 = int_to_ptr.vmem [resolvable:$true] %s41
      %47 = dma.hbm_to_vmem [thread:$0]  %s2, 256, %s42, [#allocation6], 64, 64, 4
    $region13: #{tpu_custom_call.1} parent=1 // pred_fallthru
      _
    // Predicated region
    $region14: #{tpu_custom_call.1} parent=1 // pred_check
      _
    $region15: #{tpu_custom_call.1} parent=1 // pred_check_branch
      %49 = sbr.rel (0) target = $region17
    $region16: #{tpu_custom_call.1} parent=1 // pred_region
      _
    $region17: #{tpu_custom_call.1} parent=1 // pred_fallthru
      _
    // Predicated region
    $region18: #{tpu_custom_call.1} parent=1 // pred_check
      _
    $region19: #{tpu_custom_call.1} parent=1 // pred_check_branch
      %51 = sbr.rel (0) target = $region21
    $region20: #{tpu_custom_call.1} parent=1 // pred_region
      %52 = dma.done [#allocation3], 256
    $region21: #{tpu_custom_call.1} parent=1 // pred_fallthru
      _
    // Predicated region
    $region22: #{tpu_custom_call.1} parent=1 // pred_check
      _
    $region23: #{tpu_custom_call.1} parent=1 // pred_check_branch
      %54 = sbr.rel (0) target = $region25
    $region24: #{tpu_custom_call.1} parent=1 // pred_region
      %55 = dma.done [#allocation6], 1024
    $region25: #{tpu_custom_call.1} parent=1 // pred_fallthru
      _
    // Predicated region
    $region26: #{tpu_custom_call.1} parent=1 // pred_check
      _
    $region27: #{tpu_custom_call.1} parent=1 // pred_check_branch
      %57 = sbr.rel (0) target = $region29
    $region28: #{tpu_custom_call.1} parent=1 // pred_region
      %58 = dma.done [#allocation6], 256
    $region29: #{tpu_custom_call.1} parent=1 // pred_fallthru
      _
    %v60 = vld [vmem:[#allocation2] sm:$0xff]
    %v61 = vld [vmem:[#allocation2 + $0x8] sm:$0xff]
    %v62 = vmul.f32 %v60, 0.17677669
    %v63 = vmul.f32 %v61, 0.17677669
    %v64 = vpack.c.bf16 %v62, %v62
    %v65 = vpack.c.bf16 %v63, %v63
    %v66 = vld [vmem:[#allocation5] sm:$0xff]
    %v67 = vld [vmem:[#allocation5 + $0x8] sm:$0xff]
    %v68 = vld [vmem:[#allocation5 + $0x10] sm:$0xff]
    %v69 = vld [vmem:[#allocation5 + $0x18] sm:$0xff]
    %v70 = vld [vmem:[#allocation5 + $0x20] sm:$0xff]
    %v71 = vld [vmem:[#allocation5 + $0x28] sm:$0xff]
    %v72 = vld [vmem:[#allocation5 + $0x30] sm:$0xff]
    %v73 = vld [vmem:[#allocation5 + $0x38] sm:$0xff]
    %v74 = vpack.c.bf16 %v67, %v66
    %v75 = vpack.c.bf16 %v69, %v68
    %v76 = vpack.c.bf16 %v71, %v70
    %v77 = vpack.c.bf16 %v73, %v72
    %vm78 = vcmask 261120
    %v80 = vsel %vm78, %v64, 0
    %v83 = vsel %vm78, %v74, 0
    %v86 = vsel %vm78, %v75, 0
    %88 = vmatprep.subr.bf16.mxu0 0
    %89 = vmatpush1.bf16.xpose.msra.mxu0 %v83
    %90 = vmatprep.subr.bf16.mxu0 0
    %91 = vmatpush1.bf16.xpose.msra.mxu0 %v86
    %92 = vmatprep.subr.bf16.mxu0 0
    %93 = vmatpush1.bf16.xpose.msra.mxu0 0
    %94 = vmatprep.subr.bf16.mxu0 0
    %95 = vmatpush1.bf16.xpose.msra.mxu0 0
    %96 = vmatprep.subr.bf16.mxu0 0
    %97 = vmatpush1.bf16.xpose.msra.mxu0 0
    %98 = vmatprep.subr.bf16.mxu0 0
    %99 = vmatpush1.bf16.xpose.msra.mxu0 0
    %100 = vmatprep.subr.bf16.mxu0 0
    %101 = vmatpush1.bf16.xpose.msra.mxu0 0
    %102 = vmatprep.subr.bf16.mxu0 0
    %103 = vmatpush1.bf16.xpose.msra.mxu0 0
    %104 = vmatprep.subr.bf16.mxu0 0
    %105 = vmatpush1.bf16.xpose.msra.mxu0 0
    %106 = vmatprep.subr.bf16.mxu0 0
    %107 = vmatpush1.bf16.xpose.msra.mxu0 0
    %108 = vmatprep.subr.bf16.mxu0 0
    %109 = vmatpush1.bf16.xpose.msra.mxu0 0
    %110 = vmatprep.subr.bf16.mxu0 0
    %111 = vmatpush1.bf16.xpose.msra.mxu0 0
    %112 = vmatprep.subr.bf16.mxu0 0
    %113 = vmatpush1.bf16.xpose.msra.mxu0 0
    %114 = vmatprep.subr.bf16.mxu0 0
    %115 = vmatpush1.bf16.xpose.msra.mxu0 0
    %116 = vmatprep.subr.bf16.mxu0 0
    %117 = vmatpush1.bf16.xpose.msra.mxu0 0
    %118 = vmatprep.subr.bf16.mxu0 0
    %119 = vmatpush1.bf16.xpose.msra.mxu0 0
    %120 = vmatprep.mubr.bf16.mxu0 0
    %121 = vmatmul.mubr.bf16.gmra.mrb[0].mxu0 %v80
    %v122 = vpop.f32.mrb[0].mxu0
    %v123 = vadd.f32 0.0, %v122
    %v124 = vpop.f32.mrb[0].mxu0
    %v125 = vpop.f32.mrb[0].mxu0
    %v126 = vpop.f32.mrb[0].mxu0
    %127 = vdwg.mxu0
    %v129 = vsel %vm78, %v65, 0
    %v132 = vsel %vm78, %v76, 0
    %v135 = vsel %vm78, %v77, 0
    %137 = vmatprep.subr.bf16.mxu0 0
    %138 = vmatpush1.bf16.xpose.msra.mxu0 %v132
    %139 = vmatprep.subr.bf16.mxu0 0
    %140 = vmatpush1.bf16.xpose.msra.mxu0 %v135
    %141 = vmatprep.subr.bf16.mxu0 0
    %142 = vmatpush1.bf16.xpose.msra.mxu0 0
    %143 = vmatprep.subr.bf16.mxu0 0
    %144 = vmatpush1.bf16.xpose.msra.mxu0 0
    %145 = vmatprep.subr.bf16.mxu0 0
    %146 = vmatpush1.bf16.xpose.msra.mxu0 0
    %147 = vmatprep.subr.bf16.mxu0 0
    %148 = vmatpush1.bf16.xpose.msra.mxu0 0
    %149 = vmatprep.subr.bf16.mxu0 0
    %150 = vmatpush1.bf16.xpose.msra.mxu0 0
    %151 = vmatprep.subr.bf16.mxu0 0
    %152 = vmatpush1.bf16.xpose.msra.mxu0 0
    %153 = vmatprep.subr.bf16.mxu0 0
    %154 = vmatpush1.bf16.xpose.msra.mxu0 0
    %155 = vmatprep.subr.bf16.mxu0 0
    %156 = vmatpush1.bf16.xpose.msra.mxu0 0
    %157 = vmatprep.subr.bf16.mxu0 0
    %158 = vmatpush1.bf16.xpose.msra.mxu0 0
    %159 = vmatprep.subr.bf16.mxu0 0
    %160 = vmatpush1.bf16.xpose.msra.mxu0 0
    %161 = vmatprep.subr.bf16.mxu0 0
    %162 = vmatpush1.bf16.xpose.msra.mxu0 0
    %163 = vmatprep.subr.bf16.mxu0 0
    %164 = vmatpush1.bf16.xpose.msra.mxu0 0
    %165 = vmatprep.subr.bf16.mxu0 0
    %166 = vmatpush1.bf16.xpose.msra.mxu0 0
    %167 = vmatprep.subr.bf16.mxu0 0
    %168 = vmatpush1.bf16.xpose.msra.mxu0 0
    %169 = vmatprep.mubr.bf16.mxu0 0
    %170 = vmatmul.mubr.bf16.gmra.mrb[0].mxu0 %v129
    %v171 = vpop.f32.mrb[0].mxu0
    %v172 = vadd.f32 0.0, %v171
    %v173 = vpop.f32.mrb[0].mxu0
    %v174 = vpop.f32.mrb[0].mxu0
    %v175 = vpop.f32.mrb[0].mxu0
    %176 = vdwg.mxu0
    %v177 = vsel %vm78, %v123, -inf
    %178 = vmax.xlane.f32.xlu0 %v177
    %v179 = vpop.xlane.xlu0 %178
    %v180 = vsel %vm78, %v172, -inf
    %181 = vmax.xlane.f32.xlu0 %v180
    %v182 = vpop.xlane.xlu0 %181
    %v183 = vsub.f32 %v123, %v179
    %v184 = vsub.f32 %v172, %v182
    %v185 = vmul.f32 %v183, 1.442695
    %v186 = vpow.pop %v185
    %v187 = vmul.f32 %v184, 1.442695
    %v188 = vpow.pop %v187
    %v189 = vsel %vm78, %v186, 0.0
    %190 = vadd.xlane.f32.xlu0 %v189
    %v191 = vpop.xlane.xlu0 %190
    %v192 = vsel %vm78, %v188, 0.0
    %193 = vadd.xlane.f32.xlu0 %v192
    %v194 = vpop.xlane.xlu0 %193
    %v195 = vrcp.pop %v191
    %v196 = vrcp.pop %v194
    %v197 = vmul.f32 %v186, %v195
    %v198 = vmul.f32 %v188, %v196
    %v199 = vpack.c.bf16 %v197, %v197
    %v200 = vpack.c.bf16 %v198, %v198
    %v201 = vld [vmem:[#allocation7] sm:$0xf]
    %v202 = vld [vmem:[#allocation7 + $0x4] sm:$0xf]
    %v203 = vld [vmem:[#allocation7 + $0x8] sm:$0xf]
    %v204 = vld [vmem:[#allocation7 + $0xc] sm:$0xf]
    %v205 = vld [vmem:[%s3] sm:$0x1]
    %v207 = vlaneseq
    %v208 = vshrl.u32 %v207, 7
    %v209 = vsub.s32 0, %v208
    %v210 = vrot.slane %v205, %v209
    %v214 = vunpack.c.l.b16 %v199
    %v215 = vunpack.c.l.b16 %v200
    %v216 = vpack.c.b16 %v215, %v214
    %v221 = vunpack.c.l.b16 %v201
    %v222 = vunpack.c.l.b16 %v202
    %v223 = vunpack.c.l.b16 %v203
    %v224 = vunpack.c.l.b16 %v204
    %v225 = vpack.c.b16 %v222, %v221
    %v226 = vpack.c.b16 %v224, %v223
    %v230 = vsel %vm78, %v216, 0
    %232 = vmatprep.subr.bf16.mxu0 0
    %233 = vmatpush1.bf16.msra.mxu0 %v225
    %234 = vmatprep.subr.bf16.mxu0 0
    %235 = vmatpush1.bf16.msra.mxu0 %v226
    %236 = vmatprep.subr.bf16.mxu0 0
    %237 = vmatpush1.bf16.msra.mxu0 0
    %238 = vmatprep.subr.bf16.mxu0 0
    %239 = vmatpush1.bf16.msra.mxu0 0
    %240 = vmatprep.subr.bf16.mxu0 0
    %241 = vmatpush1.bf16.msra.mxu0 0
    %242 = vmatprep.subr.bf16.mxu0 0
    %243 = vmatpush1.bf16.msra.mxu0 0
    %244 = vmatprep.subr.bf16.mxu0 0
    %245 = vmatpush1.bf16.msra.mxu0 0
    %246 = vmatprep.subr.bf16.mxu0 0
    %247 = vmatpush1.bf16.msra.mxu0 0
    %248 = vmatprep.subr.bf16.mxu0 0
    %249 = vmatpush1.bf16.msra.mxu0 0
    %250 = vmatprep.subr.bf16.mxu0 0
    %251 = vmatpush1.bf16.msra.mxu0 0
    %252 = vmatprep.subr.bf16.mxu0 0
    %253 = vmatpush1.bf16.msra.mxu0 0
    %254 = vmatprep.subr.bf16.mxu0 0
    %255 = vmatpush1.bf16.msra.mxu0 0
    %256 = vmatprep.subr.bf16.mxu0 0
    %257 = vmatpush1.bf16.msra.mxu0 0
    %258 = vmatprep.subr.bf16.mxu0 0
    %259 = vmatpush1.bf16.msra.mxu0 0
    %260 = vmatprep.subr.bf16.mxu0 0
    %261 = vmatpush1.bf16.msra.mxu0 0
    %262 = vmatprep.subr.bf16.mxu0 0
    %263 = vmatpush1.bf16.msra.mxu0 0
    %264 = vmatprep.mubr.bf16.mxu0 0
    %265 = vmatmul.mubr.bf16.gmra.mrb[0].mxu0 %v230
    %v266 = vpop.f32.mrb[0].mxu0
    %v267 = vadd.f32 %v210, %v266
    %v268 = vpop.f32.mrb[0].mxu0
    %v269 = vpop.f32.mrb[0].mxu0
    %v270 = vadd.f32 %v210, %v269
    %v271 = vpop.f32.mrb[0].mxu0
    %272 = vdwg.mxu0
    %273 = vst.msk [vmem:[#allocation8] sm:$0xff] %vm78, %v267
    %274 = vst.msk [vmem:[#allocation8 + $0x8] sm:$0xff] %vm78, %v270
    // Predicated region
    $region30: #{tpu_custom_call.1} parent=1 // pred_check
      _
    $region31: #{tpu_custom_call.1} parent=1 // pred_check_branch
      %276 = sbr.rel (0) target = $region33
    $region32: #{tpu_custom_call.1} parent=1 // pred_region
      %s278 = ssub.s32 256, 256
      %279 = vsyncadd [#allocation4], %s278
      %s280 = sshll.u32 [#allocation8], 4
      %s281 = int_to_ptr.vmem [resolvable:$true] %s280
      %286 = dma.vmem_to_hbm [thread:$0]  %s281, 256, %s4, [#allocation4], 128, 128, 8
    $region33: #{tpu_custom_call.1} parent=1 // pred_fallthru
      _
    // Predicated region
    $region34: #{tpu_custom_call.1} parent=1 // pred_check
      _
    $region35: #{tpu_custom_call.1} parent=1 // pred_check_branch
      %288 = sbr.rel (0) target = $region37
    $region36: #{tpu_custom_call.1} parent=1 // pred_region
      %289 = dma.done [#allocation4], 256
    $region37: #{tpu_custom_call.1} parent=1 // pred_fallthru
      _
    %290 = vsyncpa [#allocation3], 1
    %291 = vsyncpa [#allocation6], 1
    %292 = vsyncpa [#allocation4], 1

</llo_original>
